<compile_context>
chip_gen: v6e
topology: v6e:2x2x1
jax: 0.10.0
libtpu: 0.0.40
codegen_flags: <defaults>
</compile_context>

<pallas_src>
import functools

import jax
import jax.numpy as jnp
import numpy as np
from jax.experimental import pallas as pl
from jax.experimental.pallas import tpu as pltpu


def _nav_loss_kernel(traj_ref, out_ref, *, gamma, ent_coeff, T, B):
    """A2C-style per-episode loss + fused batch stats.

    traj_ref : [5, T_pad, B_pad] f32 VMEM ref, planes = (rewards, log_probs,
               values, entropies, masks); time on sublanes, batch on lanes.
    out_ref  : [8, B_pad] f32 VMEM ref:
        row 0: egg_loss       = -sum_t(rewards)      (per episode)
        row 1: nav_agent_loss                         (per episode)
        row 2: episode reward = sum_t(rewards)        (per episode)
        row 3: reward_mean    (broadcast scalar)
        row 4: reward_std     (broadcast scalar)
        row 5: nav_loss_mean  (broadcast scalar)
        rows 6-7: zeros (sublane padding)
    """
    B_pad = traj_ref.shape[-1]

    # One load per plane; per-step row slices below are in-vreg sublane reads.
    rw = traj_ref[0]   # [T_pad, B_pad]
    lp = traj_ref[1]
    vl = traj_ref[2]
    en = traj_ref[3]
    mk = traj_ref[4]

    g = jnp.float32(gamma)
    zero = jnp.zeros((1, B_pad), jnp.float32)
    R = zero
    actor_acc = zero
    critic_acc = zero
    ent_acc = zero
    rw_acc = zero

    # Reverse discounted-return scan: R_t = r_t + gamma * R_{t+1} * mask_t.
    # T is small & static -> unrolled at trace time with static sublane-row
    # slices; all reductions over T ride along in the same loop.
    for t in reversed(range(T)):
        r_t = rw[t:t + 1, :]
        R = r_t + g * R * mk[t:t + 1, :]
        adv = R - vl[t:t + 1, :]              # advantage (values "detached")
        actor_acc = actor_acc + lp[t:t + 1, :] * adv
        critic_acc = critic_acc + adv * adv   # (v - R)^2 == adv^2
        ent_acc = ent_acc + en[t:t + 1, :]
        rw_acc = rw_acc + r_t

    inv_T = jnp.float32(1.0 / T)
    # actor_loss + 0.5*critic_loss + entropy_bonus, all means over T.
    nav_loss = (-actor_acc + 0.5 * critic_acc - jnp.float32(ent_coeff) * ent_acc) * inv_T
    ep_reward = rw_acc
    egg_loss = -ep_reward

    # Mask padded lanes (inputs are zero-padded so these are already zero; the
    # mask is a cheap safety net), then compute the fused batch statistics.
    lane = jax.lax.broadcasted_iota(jnp.int32, (1, B_pad), 1)
    valid = (lane < B).astype(jnp.float32)
    nav_loss = nav_loss * valid
    ep_reward = ep_reward * valid
    egg_loss = egg_loss * valid

    inv_B = jnp.float32(1.0 / B)
    reward_mean = jnp.sum(ep_reward, axis=1, keepdims=True) * inv_B     # [1,1]
    nav_mean = jnp.sum(nav_loss, axis=1, keepdims=True) * inv_B         # [1,1]
    dr = (ep_reward - reward_mean) * valid
    reward_std = jnp.sqrt(jnp.sum(dr * dr, axis=1, keepdims=True) * inv_B)

    b_mean = jnp.broadcast_to(reward_mean, (1, B_pad))
    b_std = jnp.broadcast_to(reward_std, (1, B_pad))
    b_nav = jnp.broadcast_to(nav_mean, (1, B_pad))

    # Single lane-dense [8, B_pad] store (one unmasked vst + one writeback DMA).
    out_ref[...] = jnp.concatenate(
        [egg_loss, nav_loss, ep_reward, b_mean, b_std, b_nav, zero, zero],
        axis=0)


def _round_up(x, m):
    return ((x + m - 1) // m) * m


def minigrid_navigation_loss(rewards, log_probs, values, entropies, masks,
                             *, gamma, nav_entropy_coeff):
    """Wrapper: layout plumbing ([B,T] -> stacked [5,T_pad,B_pad]) + one
    pallas_call; per-episode losses + batch stats come back in a single
    lane-dense [8, B_pad] array."""
    B, T = rewards.shape
    B_pad = _round_up(max(B, 1), 128)
    T_pad = _round_up(max(T, 1), 8)

    kernel = functools.partial(_nav_loss_kernel,
                               gamma=float(gamma),
                               ent_coeff=float(nav_entropy_coeff),
                               T=int(T), B=int(B))
    vmem = pl.BlockSpec(memory_space=pltpu.MemorySpace.VMEM)

    def run(rw, lp, vl, en, mk):
        def prep(x):
            x = jnp.transpose(x.astype(jnp.float32))           # [T, B]
            return jnp.pad(x, ((0, T_pad - T), (0, B_pad - B)))
        traj = jnp.stack([prep(rw), prep(lp), prep(vl), prep(en), prep(mk)],
                         axis=0)                               # [5, T_pad, B_pad]
        return pl.pallas_call(
            kernel,
            in_specs=[vmem],
            out_specs=vmem,
            out_shape=jax.ShapeDtypeStruct((8, B_pad), jnp.float32),
        )(traj)

    out = jax.jit(run)(rewards, log_probs, values, entropies, masks)

    egg_loss = out[0, :B]          # final_loss_for_egg_framework
    nav_loss = out[1, :B]          # per-episode nav_agent_loss
    ep_reward = out[2, :B]         # per-episode total reward

    # aux_info mirrors the PyTorch dict; stats already computed in-kernel.
    aux_info = {
        'acc': out[3, 0],
        'reward_mean': out[3, 0],
        'nav_loss_mean': out[5, 0],
        'reward_std': out[4, 0],
    }
    return egg_loss, aux_info, nav_loss, ep_reward


def _numpy_reference(rw, lp, vl, en, mk, gamma, coeff):
    B, T = rw.shape
    ref_egg = np.zeros(B, np.float64)
    ref_nav = np.zeros(B, np.float64)
    for i in range(B):
        R = 0.0
        rets = []
        for t in reversed(range(T)):
            R = rw[i, t] + gamma * R * mk[i, t]
            rets.insert(0, R)
        rets = np.asarray(rets)
        adv = rets - vl[i]
        actor = -(lp[i] * adv).mean()
        critic = ((vl[i] - rets) ** 2).mean()
        ent_bonus = -coeff * en[i].mean()
        ref_nav[i] = actor + 0.5 * critic + ent_bonus
        ref_egg[i] = -rw[i].sum()
    return ref_egg, ref_nav


if __name__ == "__main__":
    B, T = 8, 16                 # batch of episodes, max_episode_steps
    gamma = 0.99
    nav_entropy_coeff = 0.01

    key = jax.random.PRNGKey(0)
    k1, k2, k3, k4, k5 = jax.random.split(key, 5)
    rewards = jax.random.uniform(k1, (B, T), jnp.float32)
    log_probs = -2.0 * jax.random.uniform(k2, (B, T), jnp.float32)
    values = jax.random.normal(k3, (B, T), jnp.float32)
    entropies = jax.random.uniform(k4, (B, T), jnp.float32)
    masks = (jax.random.uniform(k5, (B, T)) > 0.1).astype(jnp.float32)

    egg_loss, aux_info, nav_loss, ep_reward = minigrid_navigation_loss(
        rewards, log_probs, values, entropies, masks,
        gamma=gamma, nav_entropy_coeff=nav_entropy_coeff)
    egg_loss = jax.block_until_ready(egg_loss)
    nav_loss = jax.block_until_ready(nav_loss)
    aux_info = jax.block_until_ready(aux_info)

    # Self-check against a pure-numpy reference of the same math.
    ref_egg, ref_nav = _numpy_reference(
        np.asarray(rewards), np.asarray(log_probs), np.asarray(values),
        np.asarray(entropies), np.asarray(masks), gamma, nav_entropy_coeff)
    assert np.allclose(np.asarray(egg_loss), ref_egg, atol=1e-4), "egg loss mismatch"
    assert np.allclose(np.asarray(nav_loss), ref_nav, atol=1e-4), "nav loss mismatch"
    assert np.allclose(np.asarray(ep_reward), -ref_egg, atol=1e-4), "ep reward mismatch"
    assert np.allclose(float(aux_info['nav_loss_mean']), ref_nav.mean(), atol=1e-4)
    assert np.allclose(float(aux_info['reward_mean']), (-ref_egg).mean(), atol=1e-4)
    assert np.allclose(float(aux_info['reward_std']), (-ref_egg).std(), atol=1e-4)

    print("KERNEL_OK")
</pallas_src>

<mosaic_0001>
module attributes {stable_mosaic.version = 11 : i64} {
  func.func @_nav_loss_kernel(%arg0: memref<5x16x128xf32, #tpu.memory_space<vmem>>, %arg1: memref<8x128xf32, #tpu.memory_space<vmem>>) attributes {dimension_semantics = [], scalar_prefetch = 0 : i64, scratch_operands = 0 : i64, tpu.core_type = #tpu.core_type<tc>} {
    %c0 = arith.constant 0 : index
    %c0_0 = arith.constant 0 : index
    %c0_1 = arith.constant 0 : index
    %0 = vector.load %arg0[%c0, %c0_0, %c0_1] : memref<5x16x128xf32, #tpu.memory_space<vmem>>, vector<1x16x128xf32>
    %1 = vector.shape_cast %0 : vector<1x16x128xf32> to vector<16x128xf32>
    %c1 = arith.constant 1 : index
    %c0_2 = arith.constant 0 : index
    %c0_3 = arith.constant 0 : index
    %2 = vector.load %arg0[%c1, %c0_2, %c0_3] : memref<5x16x128xf32, #tpu.memory_space<vmem>>, vector<1x16x128xf32>
    %3 = vector.shape_cast %2 : vector<1x16x128xf32> to vector<16x128xf32>
    %c2 = arith.constant 2 : index
    %c0_4 = arith.constant 0 : index
    %c0_5 = arith.constant 0 : index
    %4 = vector.load %arg0[%c2, %c0_4, %c0_5] : memref<5x16x128xf32, #tpu.memory_space<vmem>>, vector<1x16x128xf32>
    %5 = vector.shape_cast %4 : vector<1x16x128xf32> to vector<16x128xf32>
    %c3 = arith.constant 3 : index
    %c0_6 = arith.constant 0 : index
    %c0_7 = arith.constant 0 : index
    %6 = vector.load %arg0[%c3, %c0_6, %c0_7] : memref<5x16x128xf32, #tpu.memory_space<vmem>>, vector<1x16x128xf32>
    %7 = vector.shape_cast %6 : vector<1x16x128xf32> to vector<16x128xf32>
    %c4 = arith.constant 4 : index
    %c0_8 = arith.constant 0 : index
    %c0_9 = arith.constant 0 : index
    %8 = vector.load %arg0[%c4, %c0_8, %c0_9] : memref<5x16x128xf32, #tpu.memory_space<vmem>>, vector<1x16x128xf32>
    %9 = vector.shape_cast %8 : vector<1x16x128xf32> to vector<16x128xf32>
    %cst = arith.constant 0.000000e+00 : f32
    %10 = vector.broadcast %cst : f32 to vector<1x128xf32>
    %11 = vector.extract_strided_slice %1 {offsets = [15, 0], sizes = [1, 128], strides = [1, 1]} : vector<16x128xf32> to vector<1x128xf32>
    %cst_10 = arith.constant 9.900000e-01 : f32
    %12 = vector.broadcast %cst_10 : f32 to vector<1x128xf32>
    %13 = arith.mulf %12, %10 : vector<1x128xf32>
    %14 = vector.extract_strided_slice %9 {offsets = [15, 0], sizes = [1, 128], strides = [1, 1]} : vector<16x128xf32> to vector<1x128xf32>
    %15 = arith.mulf %13, %14 : vector<1x128xf32>
    %16 = arith.addf %11, %15 : vector<1x128xf32>
    %17 = vector.extract_strided_slice %5 {offsets = [15, 0], sizes = [1, 128], strides = [1, 1]} : vector<16x128xf32> to vector<1x128xf32>
    %18 = arith.subf %16, %17 : vector<1x128xf32>
    %19 = vector.extract_strided_slice %3 {offsets = [15, 0], sizes = [1, 128], strides = [1, 1]} : vector<16x128xf32> to vector<1x128xf32>
    %20 = arith.mulf %19, %18 : vector<1x128xf32>
    %21 = arith.addf %10, %20 : vector<1x128xf32>
    %22 = arith.mulf %18, %18 : vector<1x128xf32>
    %23 = arith.addf %10, %22 : vector<1x128xf32>
    %24 = vector.extract_strided_slice %7 {offsets = [15, 0], sizes = [1, 128], strides = [1, 1]} : vector<16x128xf32> to vector<1x128xf32>
    %25 = arith.addf %10, %24 : vector<1x128xf32>
    %26 = arith.addf %10, %11 : vector<1x128xf32>
    %27 = vector.extract_strided_slice %1 {offsets = [14, 0], sizes = [1, 128], strides = [1, 1]} : vector<16x128xf32> to vector<1x128xf32>
    %cst_11 = arith.constant 9.900000e-01 : f32
    %28 = vector.broadcast %cst_11 : f32 to vector<1x128xf32>
    %29 = arith.mulf %28, %16 : vector<1x128xf32>
    %30 = vector.extract_strided_slice %9 {offsets = [14, 0], sizes = [1, 128], strides = [1, 1]} : vector<16x128xf32> to vector<1x128xf32>
    %31 = arith.mulf %29, %30 : vector<1x128xf32>
    %32 = arith.addf %27, %31 : vector<1x128xf32>
    %33 = vector.extract_strided_slice %5 {offsets = [14, 0], sizes = [1, 128], strides = [1, 1]} : vector<16x128xf32> to vector<1x128xf32>
    %34 = arith.subf %32, %33 : vector<1x128xf32>
    %35 = vector.extract_strided_slice %3 {offsets = [14, 0], sizes = [1, 128], strides = [1, 1]} : vector<16x128xf32> to vector<1x128xf32>
    %36 = arith.mulf %35, %34 : vector<1x128xf32>
    %37 = arith.addf %21, %36 : vector<1x128xf32>
    %38 = arith.mulf %34, %34 : vector<1x128xf32>
    %39 = arith.addf %23, %38 : vector<1x128xf32>
    %40 = vector.extract_strided_slice %7 {offsets = [14, 0], sizes = [1, 128], strides = [1, 1]} : vector<16x128xf32> to vector<1x128xf32>
    %41 = arith.addf %25, %40 : vector<1x128xf32>
    %42 = arith.addf %26, %27 : vector<1x128xf32>
    %43 = vector.extract_strided_slice %1 {offsets = [13, 0], sizes = [1, 128], strides = [1, 1]} : vector<16x128xf32> to vector<1x128xf32>
    %cst_12 = arith.constant 9.900000e-01 : f32
    %44 = vector.broadcast %cst_12 : f32 to vector<1x128xf32>
    %45 = arith.mulf %44, %32 : vector<1x128xf32>
    %46 = vector.extract_strided_slice %9 {offsets = [13, 0], sizes = [1, 128], strides = [1, 1]} : vector<16x128xf32> to vector<1x128xf32>
    %47 = arith.mulf %45, %46 : vector<1x128xf32>
    %48 = arith.addf %43, %47 : vector<1x128xf32>
    %49 = vector.extract_strided_slice %5 {offsets = [13, 0], sizes = [1, 128], strides = [1, 1]} : vector<16x128xf32> to vector<1x128xf32>
    %50 = arith.subf %48, %49 : vector<1x128xf32>
    %51 = vector.extract_strided_slice %3 {offsets = [13, 0], sizes = [1, 128], strides = [1, 1]} : vector<16x128xf32> to vector<1x128xf32>
    %52 = arith.mulf %51, %50 : vector<1x128xf32>
    %53 = arith.addf %37, %52 : vector<1x128xf32>
    %54 = arith.mulf %50, %50 : vector<1x128xf32>
    %55 = arith.addf %39, %54 : vector<1x128xf32>
    %56 = vector.extract_strided_slice %7 {offsets = [13, 0], sizes = [1, 128], strides = [1, 1]} : vector<16x128xf32> to vector<1x128xf32>
    %57 = arith.addf %41, %56 : vector<1x128xf32>
    %58 = arith.addf %42, %43 : vector<1x128xf32>
    %59 = vector.extract_strided_slice %1 {offsets = [12, 0], sizes = [1, 128], strides = [1, 1]} : vector<16x128xf32> to vector<1x128xf32>
    %cst_13 = arith.constant 9.900000e-01 : f32
    %60 = vector.broadcast %cst_13 : f32 to vector<1x128xf32>
    %61 = arith.mulf %60, %48 : vector<1x128xf32>
    %62 = vector.extract_strided_slice %9 {offsets = [12, 0], sizes = [1, 128], strides = [1, 1]} : vector<16x128xf32> to vector<1x128xf32>
    %63 = arith.mulf %61, %62 : vector<1x128xf32>
    %64 = arith.addf %59, %63 : vector<1x128xf32>
    %65 = vector.extract_strided_slice %5 {offsets = [12, 0], sizes = [1, 128], strides = [1, 1]} : vector<16x128xf32> to vector<1x128xf32>
    %66 = arith.subf %64, %65 : vector<1x128xf32>
    %67 = vector.extract_strided_slice %3 {offsets = [12, 0], sizes = [1, 128], strides = [1, 1]} : vector<16x128xf32> to vector<1x128xf32>
    %68 = arith.mulf %67, %66 : vector<1x128xf32>
    %69 = arith.addf %53, %68 : vector<1x128xf32>
    %70 = arith.mulf %66, %66 : vector<1x128xf32>
    %71 = arith.addf %55, %70 : vector<1x128xf32>
    %72 = vector.extract_strided_slice %7 {offsets = [12, 0], sizes = [1, 128], strides = [1, 1]} : vector<16x128xf32> to vector<1x128xf32>
    %73 = arith.addf %57, %72 : vector<1x128xf32>
    %74 = arith.addf %58, %59 : vector<1x128xf32>
    %75 = vector.extract_strided_slice %1 {offsets = [11, 0], sizes = [1, 128], strides = [1, 1]} : vector<16x128xf32> to vector<1x128xf32>
    %cst_14 = arith.constant 9.900000e-01 : f32
    %76 = vector.broadcast %cst_14 : f32 to vector<1x128xf32>
    %77 = arith.mulf %76, %64 : vector<1x128xf32>
    %78 = vector.extract_strided_slice %9 {offsets = [11, 0], sizes = [1, 128], strides = [1, 1]} : vector<16x128xf32> to vector<1x128xf32>
    %79 = arith.mulf %77, %78 : vector<1x128xf32>
    %80 = arith.addf %75, %79 : vector<1x128xf32>
    %81 = vector.extract_strided_slice %5 {offsets = [11, 0], sizes = [1, 128], strides = [1, 1]} : vector<16x128xf32> to vector<1x128xf32>
    %82 = arith.subf %80, %81 : vector<1x128xf32>
    %83 = vector.extract_strided_slice %3 {offsets = [11, 0], sizes = [1, 128], strides = [1, 1]} : vector<16x128xf32> to vector<1x128xf32>
    %84 = arith.mulf %83, %82 : vector<1x128xf32>
    %85 = arith.addf %69, %84 : vector<1x128xf32>
    %86 = arith.mulf %82, %82 : vector<1x128xf32>
    %87 = arith.addf %71, %86 : vector<1x128xf32>
    %88 = vector.extract_strided_slice %7 {offsets = [11, 0], sizes = [1, 128], strides = [1, 1]} : vector<16x128xf32> to vector<1x128xf32>
    %89 = arith.addf %73, %88 : vector<1x128xf32>
    %90 = arith.addf %74, %75 : vector<1x128xf32>
    %91 = vector.extract_strided_slice %1 {offsets = [10, 0], sizes = [1, 128], strides = [1, 1]} : vector<16x128xf32> to vector<1x128xf32>
    %cst_15 = arith.constant 9.900000e-01 : f32
    %92 = vector.broadcast %cst_15 : f32 to vector<1x128xf32>
    %93 = arith.mulf %92, %80 : vector<1x128xf32>
    %94 = vector.extract_strided_slice %9 {offsets = [10, 0], sizes = [1, 128], strides = [1, 1]} : vector<16x128xf32> to vector<1x128xf32>
    %95 = arith.mulf %93, %94 : vector<1x128xf32>
    %96 = arith.addf %91, %95 : vector<1x128xf32>
    %97 = vector.extract_strided_slice %5 {offsets = [10, 0], sizes = [1, 128], strides = [1, 1]} : vector<16x128xf32> to vector<1x128xf32>
    %98 = arith.subf %96, %97 : vector<1x128xf32>
    %99 = vector.extract_strided_slice %3 {offsets = [10, 0], sizes = [1, 128], strides = [1, 1]} : vector<16x128xf32> to vector<1x128xf32>
    %100 = arith.mulf %99, %98 : vector<1x128xf32>
    %101 = arith.addf %85, %100 : vector<1x128xf32>
    %102 = arith.mulf %98, %98 : vector<1x128xf32>
    %103 = arith.addf %87, %102 : vector<1x128xf32>
    %104 = vector.extract_strided_slice %7 {offsets = [10, 0], sizes = [1, 128], strides = [1, 1]} : vector<16x128xf32> to vector<1x128xf32>
    %105 = arith.addf %89, %104 : vector<1x128xf32>
    %106 = arith.addf %90, %91 : vector<1x128xf32>
    %107 = vector.extract_strided_slice %1 {offsets = [9, 0], sizes = [1, 128], strides = [1, 1]} : vector<16x128xf32> to vector<1x128xf32>
    %cst_16 = arith.constant 9.900000e-01 : f32
    %108 = vector.broadcast %cst_16 : f32 to vector<1x128xf32>
    %109 = arith.mulf %108, %96 : vector<1x128xf32>
    %110 = vector.extract_strided_slice %9 {offsets = [9, 0], sizes = [1, 128], strides = [1, 1]} : vector<16x128xf32> to vector<1x128xf32>
    %111 = arith.mulf %109, %110 : vector<1x128xf32>
    %112 = arith.addf %107, %111 : vector<1x128xf32>
    %113 = vector.extract_strided_slice %5 {offsets = [9, 0], sizes = [1, 128], strides = [1, 1]} : vector<16x128xf32> to vector<1x128xf32>
    %114 = arith.subf %112, %113 : vector<1x128xf32>
    %115 = vector.extract_strided_slice %3 {offsets = [9, 0], sizes = [1, 128], strides = [1, 1]} : vector<16x128xf32> to vector<1x128xf32>
    %116 = arith.mulf %115, %114 : vector<1x128xf32>
    %117 = arith.addf %101, %116 : vector<1x128xf32>
    %118 = arith.mulf %114, %114 : vector<1x128xf32>
    %119 = arith.addf %103, %118 : vector<1x128xf32>
    %120 = vector.extract_strided_slice %7 {offsets = [9, 0], sizes = [1, 128], strides = [1, 1]} : vector<16x128xf32> to vector<1x128xf32>
    %121 = arith.addf %105, %120 : vector<1x128xf32>
    %122 = arith.addf %106, %107 : vector<1x128xf32>
    %123 = vector.extract_strided_slice %1 {offsets = [8, 0], sizes = [1, 128], strides = [1, 1]} : vector<16x128xf32> to vector<1x128xf32>
    %cst_17 = arith.constant 9.900000e-01 : f32
    %124 = vector.broadcast %cst_17 : f32 to vector<1x128xf32>
    %125 = arith.mulf %124, %112 : vector<1x128xf32>
    %126 = vector.extract_strided_slice %9 {offsets = [8, 0], sizes = [1, 128], strides = [1, 1]} : vector<16x128xf32> to vector<1x128xf32>
    %127 = arith.mulf %125, %126 : vector<1x128xf32>
    %128 = arith.addf %123, %127 : vector<1x128xf32>
    %129 = vector.extract_strided_slice %5 {offsets = [8, 0], sizes = [1, 128], strides = [1, 1]} : vector<16x128xf32> to vector<1x128xf32>
    %130 = arith.subf %128, %129 : vector<1x128xf32>
    %131 = vector.extract_strided_slice %3 {offsets = [8, 0], sizes = [1, 128], strides = [1, 1]} : vector<16x128xf32> to vector<1x128xf32>
    %132 = arith.mulf %131, %130 : vector<1x128xf32>
    %133 = arith.addf %117, %132 : vector<1x128xf32>
    %134 = arith.mulf %130, %130 : vector<1x128xf32>
    %135 = arith.addf %119, %134 : vector<1x128xf32>
    %136 = vector.extract_strided_slice %7 {offsets = [8, 0], sizes = [1, 128], strides = [1, 1]} : vector<16x128xf32> to vector<1x128xf32>
    %137 = arith.addf %121, %136 : vector<1x128xf32>
    %138 = arith.addf %122, %123 : vector<1x128xf32>
    %139 = vector.extract_strided_slice %1 {offsets = [7, 0], sizes = [1, 128], strides = [1, 1]} : vector<16x128xf32> to vector<1x128xf32>
    %cst_18 = arith.constant 9.900000e-01 : f32
    %140 = vector.broadcast %cst_18 : f32 to vector<1x128xf32>
    %141 = arith.mulf %140, %128 : vector<1x128xf32>
    %142 = vector.extract_strided_slice %9 {offsets = [7, 0], sizes = [1, 128], strides = [1, 1]} : vector<16x128xf32> to vector<1x128xf32>
    %143 = arith.mulf %141, %142 : vector<1x128xf32>
    %144 = arith.addf %139, %143 : vector<1x128xf32>
    %145 = vector.extract_strided_slice %5 {offsets = [7, 0], sizes = [1, 128], strides = [1, 1]} : vector<16x128xf32> to vector<1x128xf32>
    %146 = arith.subf %144, %145 : vector<1x128xf32>
    %147 = vector.extract_strided_slice %3 {offsets = [7, 0], sizes = [1, 128], strides = [1, 1]} : vector<16x128xf32> to vector<1x128xf32>
    %148 = arith.mulf %147, %146 : vector<1x128xf32>
    %149 = arith.addf %133, %148 : vector<1x128xf32>
    %150 = arith.mulf %146, %146 : vector<1x128xf32>
    %151 = arith.addf %135, %150 : vector<1x128xf32>
    %152 = vector.extract_strided_slice %7 {offsets = [7, 0], sizes = [1, 128], strides = [1, 1]} : vector<16x128xf32> to vector<1x128xf32>
    %153 = arith.addf %137, %152 : vector<1x128xf32>
    %154 = arith.addf %138, %139 : vector<1x128xf32>
    %155 = vector.extract_strided_slice %1 {offsets = [6, 0], sizes = [1, 128], strides = [1, 1]} : vector<16x128xf32> to vector<1x128xf32>
    %cst_19 = arith.constant 9.900000e-01 : f32
    %156 = vector.broadcast %cst_19 : f32 to vector<1x128xf32>
    %157 = arith.mulf %156, %144 : vector<1x128xf32>
    %158 = vector.extract_strided_slice %9 {offsets = [6, 0], sizes = [1, 128], strides = [1, 1]} : vector<16x128xf32> to vector<1x128xf32>
    %159 = arith.mulf %157, %158 : vector<1x128xf32>
    %160 = arith.addf %155, %159 : vector<1x128xf32>
    %161 = vector.extract_strided_slice %5 {offsets = [6, 0], sizes = [1, 128], strides = [1, 1]} : vector<16x128xf32> to vector<1x128xf32>
    %162 = arith.subf %160, %161 : vector<1x128xf32>
    %163 = vector.extract_strided_slice %3 {offsets = [6, 0], sizes = [1, 128], strides = [1, 1]} : vector<16x128xf32> to vector<1x128xf32>
    %164 = arith.mulf %163, %162 : vector<1x128xf32>
    %165 = arith.addf %149, %164 : vector<1x128xf32>
    %166 = arith.mulf %162, %162 : vector<1x128xf32>
    %167 = arith.addf %151, %166 : vector<1x128xf32>
    %168 = vector.extract_strided_slice %7 {offsets = [6, 0], sizes = [1, 128], strides = [1, 1]} : vector<16x128xf32> to vector<1x128xf32>
    %169 = arith.addf %153, %168 : vector<1x128xf32>
    %170 = arith.addf %154, %155 : vector<1x128xf32>
    %171 = vector.extract_strided_slice %1 {offsets = [5, 0], sizes = [1, 128], strides = [1, 1]} : vector<16x128xf32> to vector<1x128xf32>
    %cst_20 = arith.constant 9.900000e-01 : f32
    %172 = vector.broadcast %cst_20 : f32 to vector<1x128xf32>
    %173 = arith.mulf %172, %160 : vector<1x128xf32>
    %174 = vector.extract_strided_slice %9 {offsets = [5, 0], sizes = [1, 128], strides = [1, 1]} : vector<16x128xf32> to vector<1x128xf32>
    %175 = arith.mulf %173, %174 : vector<1x128xf32>
    %176 = arith.addf %171, %175 : vector<1x128xf32>
    %177 = vector.extract_strided_slice %5 {offsets = [5, 0], sizes = [1, 128], strides = [1, 1]} : vector<16x128xf32> to vector<1x128xf32>
    %178 = arith.subf %176, %177 : vector<1x128xf32>
    %179 = vector.extract_strided_slice %3 {offsets = [5, 0], sizes = [1, 128], strides = [1, 1]} : vector<16x128xf32> to vector<1x128xf32>
    %180 = arith.mulf %179, %178 : vector<1x128xf32>
    %181 = arith.addf %165, %180 : vector<1x128xf32>
    %182 = arith.mulf %178, %178 : vector<1x128xf32>
    %183 = arith.addf %167, %182 : vector<1x128xf32>
    %184 = vector.extract_strided_slice %7 {offsets = [5, 0], sizes = [1, 128], strides = [1, 1]} : vector<16x128xf32> to vector<1x128xf32>
    %185 = arith.addf %169, %184 : vector<1x128xf32>
    %186 = arith.addf %170, %171 : vector<1x128xf32>
    %187 = vector.extract_strided_slice %1 {offsets = [4, 0], sizes = [1, 128], strides = [1, 1]} : vector<16x128xf32> to vector<1x128xf32>
    %cst_21 = arith.constant 9.900000e-01 : f32
    %188 = vector.broadcast %cst_21 : f32 to vector<1x128xf32>
    %189 = arith.mulf %188, %176 : vector<1x128xf32>
    %190 = vector.extract_strided_slice %9 {offsets = [4, 0], sizes = [1, 128], strides = [1, 1]} : vector<16x128xf32> to vector<1x128xf32>
    %191 = arith.mulf %189, %190 : vector<1x128xf32>
    %192 = arith.addf %187, %191 : vector<1x128xf32>
    %193 = vector.extract_strided_slice %5 {offsets = [4, 0], sizes = [1, 128], strides = [1, 1]} : vector<16x128xf32> to vector<1x128xf32>
    %194 = arith.subf %192, %193 : vector<1x128xf32>
    %195 = vector.extract_strided_slice %3 {offsets = [4, 0], sizes = [1, 128], strides = [1, 1]} : vector<16x128xf32> to vector<1x128xf32>
    %196 = arith.mulf %195, %194 : vector<1x128xf32>
    %197 = arith.addf %181, %196 : vector<1x128xf32>
    %198 = arith.mulf %194, %194 : vector<1x128xf32>
    %199 = arith.addf %183, %198 : vector<1x128xf32>
    %200 = vector.extract_strided_slice %7 {offsets = [4, 0], sizes = [1, 128], strides = [1, 1]} : vector<16x128xf32> to vector<1x128xf32>
    %201 = arith.addf %185, %200 : vector<1x128xf32>
    %202 = arith.addf %186, %187 : vector<1x128xf32>
    %203 = vector.extract_strided_slice %1 {offsets = [3, 0], sizes = [1, 128], strides = [1, 1]} : vector<16x128xf32> to vector<1x128xf32>
    %cst_22 = arith.constant 9.900000e-01 : f32
    %204 = vector.broadcast %cst_22 : f32 to vector<1x128xf32>
    %205 = arith.mulf %204, %192 : vector<1x128xf32>
    %206 = vector.extract_strided_slice %9 {offsets = [3, 0], sizes = [1, 128], strides = [1, 1]} : vector<16x128xf32> to vector<1x128xf32>
    %207 = arith.mulf %205, %206 : vector<1x128xf32>
    %208 = arith.addf %203, %207 : vector<1x128xf32>
    %209 = vector.extract_strided_slice %5 {offsets = [3, 0], sizes = [1, 128], strides = [1, 1]} : vector<16x128xf32> to vector<1x128xf32>
    %210 = arith.subf %208, %209 : vector<1x128xf32>
    %211 = vector.extract_strided_slice %3 {offsets = [3, 0], sizes = [1, 128], strides = [1, 1]} : vector<16x128xf32> to vector<1x128xf32>
    %212 = arith.mulf %211, %210 : vector<1x128xf32>
    %213 = arith.addf %197, %212 : vector<1x128xf32>
    %214 = arith.mulf %210, %210 : vector<1x128xf32>
    %215 = arith.addf %199, %214 : vector<1x128xf32>
    %216 = vector.extract_strided_slice %7 {offsets = [3, 0], sizes = [1, 128], strides = [1, 1]} : vector<16x128xf32> to vector<1x128xf32>
    %217 = arith.addf %201, %216 : vector<1x128xf32>
    %218 = arith.addf %202, %203 : vector<1x128xf32>
    %219 = vector.extract_strided_slice %1 {offsets = [2, 0], sizes = [1, 128], strides = [1, 1]} : vector<16x128xf32> to vector<1x128xf32>
    %cst_23 = arith.constant 9.900000e-01 : f32
    %220 = vector.broadcast %cst_23 : f32 to vector<1x128xf32>
    %221 = arith.mulf %220, %208 : vector<1x128xf32>
    %222 = vector.extract_strided_slice %9 {offsets = [2, 0], sizes = [1, 128], strides = [1, 1]} : vector<16x128xf32> to vector<1x128xf32>
    %223 = arith.mulf %221, %222 : vector<1x128xf32>
    %224 = arith.addf %219, %223 : vector<1x128xf32>
    %225 = vector.extract_strided_slice %5 {offsets = [2, 0], sizes = [1, 128], strides = [1, 1]} : vector<16x128xf32> to vector<1x128xf32>
    %226 = arith.subf %224, %225 : vector<1x128xf32>
    %227 = vector.extract_strided_slice %3 {offsets = [2, 0], sizes = [1, 128], strides = [1, 1]} : vector<16x128xf32> to vector<1x128xf32>
    %228 = arith.mulf %227, %226 : vector<1x128xf32>
    %229 = arith.addf %213, %228 : vector<1x128xf32>
    %230 = arith.mulf %226, %226 : vector<1x128xf32>
    %231 = arith.addf %215, %230 : vector<1x128xf32>
    %232 = vector.extract_strided_slice %7 {offsets = [2, 0], sizes = [1, 128], strides = [1, 1]} : vector<16x128xf32> to vector<1x128xf32>
    %233 = arith.addf %217, %232 : vector<1x128xf32>
    %234 = arith.addf %218, %219 : vector<1x128xf32>
    %235 = vector.extract_strided_slice %1 {offsets = [1, 0], sizes = [1, 128], strides = [1, 1]} : vector<16x128xf32> to vector<1x128xf32>
    %cst_24 = arith.constant 9.900000e-01 : f32
    %236 = vector.broadcast %cst_24 : f32 to vector<1x128xf32>
    %237 = arith.mulf %236, %224 : vector<1x128xf32>
    %238 = vector.extract_strided_slice %9 {offsets = [1, 0], sizes = [1, 128], strides = [1, 1]} : vector<16x128xf32> to vector<1x128xf32>
    %239 = arith.mulf %237, %238 : vector<1x128xf32>
    %240 = arith.addf %235, %239 : vector<1x128xf32>
    %241 = vector.extract_strided_slice %5 {offsets = [1, 0], sizes = [1, 128], strides = [1, 1]} : vector<16x128xf32> to vector<1x128xf32>
    %242 = arith.subf %240, %241 : vector<1x128xf32>
    %243 = vector.extract_strided_slice %3 {offsets = [1, 0], sizes = [1, 128], strides = [1, 1]} : vector<16x128xf32> to vector<1x128xf32>
    %244 = arith.mulf %243, %242 : vector<1x128xf32>
    %245 = arith.addf %229, %244 : vector<1x128xf32>
    %246 = arith.mulf %242, %242 : vector<1x128xf32>
    %247 = arith.addf %231, %246 : vector<1x128xf32>
    %248 = vector.extract_strided_slice %7 {offsets = [1, 0], sizes = [1, 128], strides = [1, 1]} : vector<16x128xf32> to vector<1x128xf32>
    %249 = arith.addf %233, %248 : vector<1x128xf32>
    %250 = arith.addf %234, %235 : vector<1x128xf32>
    %251 = vector.extract_strided_slice %1 {offsets = [0, 0], sizes = [1, 128], strides = [1, 1]} : vector<16x128xf32> to vector<1x128xf32>
    %cst_25 = arith.constant 9.900000e-01 : f32
    %252 = vector.broadcast %cst_25 : f32 to vector<1x128xf32>
    %253 = arith.mulf %252, %240 : vector<1x128xf32>
    %254 = vector.extract_strided_slice %9 {offsets = [0, 0], sizes = [1, 128], strides = [1, 1]} : vector<16x128xf32> to vector<1x128xf32>
    %255 = arith.mulf %253, %254 : vector<1x128xf32>
    %256 = arith.addf %251, %255 : vector<1x128xf32>
    %257 = vector.extract_strided_slice %5 {offsets = [0, 0], sizes = [1, 128], strides = [1, 1]} : vector<16x128xf32> to vector<1x128xf32>
    %258 = arith.subf %256, %257 : vector<1x128xf32>
    %259 = vector.extract_strided_slice %3 {offsets = [0, 0], sizes = [1, 128], strides = [1, 1]} : vector<16x128xf32> to vector<1x128xf32>
    %260 = arith.mulf %259, %258 : vector<1x128xf32>
    %261 = arith.addf %245, %260 : vector<1x128xf32>
    %262 = arith.mulf %258, %258 : vector<1x128xf32>
    %263 = arith.addf %247, %262 : vector<1x128xf32>
    %264 = vector.extract_strided_slice %7 {offsets = [0, 0], sizes = [1, 128], strides = [1, 1]} : vector<16x128xf32> to vector<1x128xf32>
    %265 = arith.addf %249, %264 : vector<1x128xf32>
    %266 = arith.addf %250, %251 : vector<1x128xf32>
    %cst_26 = arith.constant 0.000000e+00 : f32
    %267 = vector.broadcast %cst_26 : f32 to vector<1x128xf32>
    %268 = arith.subf %267, %261 : vector<1x128xf32>
    %cst_27 = arith.constant 5.000000e-01 : f32
    %269 = vector.broadcast %cst_27 : f32 to vector<1x128xf32>
    %270 = arith.mulf %269, %263 : vector<1x128xf32>
    %271 = arith.addf %268, %270 : vector<1x128xf32>
    %cst_28 = arith.constant 0.00999999977 : f32
    %272 = vector.broadcast %cst_28 : f32 to vector<1x128xf32>
    %273 = arith.mulf %272, %265 : vector<1x128xf32>
    %274 = arith.subf %271, %273 : vector<1x128xf32>
    %cst_29 = arith.constant 6.250000e-02 : f32
    %275 = vector.broadcast %cst_29 : f32 to vector<1x128xf32>
    %276 = arith.mulf %274, %275 : vector<1x128xf32>
    %cst_30 = arith.constant 0.000000e+00 : f32
    %277 = vector.broadcast %cst_30 : f32 to vector<1x128xf32>
    %278 = arith.subf %277, %266 : vector<1x128xf32>
    %279 = tpu.iota {dimensions = array<i32: 1>} : vector<1x128xi32>
    %c8_i32 = arith.constant 8 : i32
    %280 = vector.broadcast %c8_i32 : i32 to vector<1x128xi32>
    %281 = arith.cmpi slt, %279, %280 : vector<1x128xi32>
    %282 = arith.extui %281 : vector<1x128xi1> to vector<1x128xi32>
    %283 = arith.sitofp %282 : vector<1x128xi32> to vector<1x128xf32>
    %284 = arith.mulf %276, %283 : vector<1x128xf32>
    %285 = arith.mulf %266, %283 : vector<1x128xf32>
    %286 = arith.mulf %278, %283 : vector<1x128xf32>
    %cst_31 = arith.constant dense<0.000000e+00> : vector<1xf32>
    %287 = vector.multi_reduction <add>, %285, %cst_31 [1] : vector<1x128xf32> to vector<1xf32>
    %288 = vector.shape_cast %287 : vector<1xf32> to vector<1x1xf32>
    %cst_32 = arith.constant 1.250000e-01 : f32
    %289 = vector.broadcast %cst_32 : f32 to vector<1x1xf32>
    %290 = arith.mulf %288, %289 : vector<1x1xf32>
    %cst_33 = arith.constant dense<0.000000e+00> : vector<1xf32>
    %291 = vector.multi_reduction <add>, %284, %cst_33 [1] : vector<1x128xf32> to vector<1xf32>
    %292 = vector.shape_cast %291 : vector<1xf32> to vector<1x1xf32>
    %cst_34 = arith.constant 1.250000e-01 : f32
    %293 = vector.broadcast %cst_34 : f32 to vector<1x1xf32>
    %294 = arith.mulf %292, %293 : vector<1x1xf32>
    %295 = vector.broadcast %290 : vector<1x1xf32> to vector<1x128xf32>
    %296 = arith.subf %285, %295 : vector<1x128xf32>
    %297 = arith.mulf %296, %283 : vector<1x128xf32>
    %298 = arith.mulf %297, %297 : vector<1x128xf32>
    %cst_35 = arith.constant dense<0.000000e+00> : vector<1xf32>
    %299 = vector.multi_reduction <add>, %298, %cst_35 [1] : vector<1x128xf32> to vector<1xf32>
    %300 = vector.shape_cast %299 : vector<1xf32> to vector<1x1xf32>
    %cst_36 = arith.constant 1.250000e-01 : f32
    %301 = vector.broadcast %cst_36 : f32 to vector<1x1xf32>
    %302 = arith.mulf %300, %301 : vector<1x1xf32>
    %303 = math.sqrt %302 : vector<1x1xf32>
    %304 = vector.shape_cast %290 : vector<1x1xf32> to vector<1x1xf32>
    %305 = vector.broadcast %304 : vector<1x1xf32> to vector<1x128xf32>
    %306 = vector.shape_cast %303 : vector<1x1xf32> to vector<1x1xf32>
    %307 = vector.broadcast %306 : vector<1x1xf32> to vector<1x128xf32>
    %308 = vector.shape_cast %294 : vector<1x1xf32> to vector<1x1xf32>
    %309 = vector.broadcast %308 : vector<1x1xf32> to vector<1x128xf32>
    %310 = tpu.concatenate %286, %284, %285, %305, %307, %309, %10, %10 in 0 : vector<1x128xf32>, vector<1x128xf32>, vector<1x128xf32>, vector<1x128xf32>, vector<1x128xf32>, vector<1x128xf32>, vector<1x128xf32>, vector<1x128xf32> -> vector<8x128xf32>
    %c0_37 = arith.constant 0 : index
    %c0_38 = arith.constant 0 : index
    %311 = vector.load %arg1[%c0_37, %c0_38] : memref<8x128xf32, #tpu.memory_space<vmem>>, vector<8x128xf32>
    tpu.vector_store %arg1[%c0_37, %c0_38], %310 {strides = array<i32>} : memref<8x128xf32, #tpu.memory_space<vmem>>, vector<8x128xf32>,
    return
  }
}

</mosaic_0001>

<llo_original>
// kernel: run.1
$region0: #{run.1}
  #allocation0 [shape = 'u32[]', space=smem, size = 0x4, offset = 0x4, fixed_abs, tag = 'smem constant byte address 0x4 - core index']
  #allocation1 [shape = 'u32[144,128]{1,0:T(1,128)}', space=vmem, size = 0x12000, scoped, tag = 'internal scratch']
  %s0 = inlined_call_operand.vmem [shape: f32[5,16,128], index: 0, kind: input, shape index: {}]
  %s1 = inlined_call_operand.hbm [shape: f32[8,128], index: 1, kind: output, shape index: {}]
  %s2 = sld [smem:[#allocation0]]
  $region14: #{run.1} parent=0
    _
  %s4 = ssub.s32 1, %s2
  %s5 = scalar_select 0, %s4, %s2
  $region1: #{run.1} parent=0
    #allocation2 [shape = 'u8[4096]{0}', space=vmem, size = 0x1000, scoped, tag = 'output window, operand 0, single buffered']
    #allocation3 [shape = 's32[1]{0}', space=sflag, size = 0x4, scoped, tag = 'scoped memory for run.1']
    %6 = vsyncpa [#allocation3], 0
    // Predicated region
    $region2: #{run.1} parent=1 // pred_check
      _
    $region3: #{run.1} parent=1 // pred_check_branch
      %8 = sbr.rel (0) target = $region5
    $region4: #{run.1} parent=1 // pred_region
      _
    $region5: #{run.1} parent=1 // pred_fallthru
      _
    %v9 = vld [vmem:[%s0] sm:$0xff]
    %v10 = vld [vmem:[%s0 + $0x8] sm:$0xff]
    %s11 = scalar_lea.vmem %s0, 16
    %v12 = vld [vmem:[%s11] sm:$0xff]
    %v13 = vld [vmem:[%s11 + $0x8] sm:$0xff]
    %s14 = scalar_lea.vmem %s0, 32
    %v15 = vld [vmem:[%s14] sm:$0xff]
    %v16 = vld [vmem:[%s14 + $0x8] sm:$0xff]
    %s17 = scalar_lea.vmem %s0, 48
    %v18 = vld [vmem:[%s17] sm:$0xff]
    %v19 = vld [vmem:[%s17 + $0x8] sm:$0xff]
    %s20 = scalar_lea.vmem %s0, 64
    %v21 = vld [vmem:[%s20] sm:$0xff]
    %v22 = vld [vmem:[%s20 + $0x8] sm:$0xff]
    %v23 = vmul.f32 %v22, 0.0
    %v24 = vadd.f32 %v10, %v23
    %v25 = vsub.f32 %v24, %v16
    %v26 = vmul.f32 %v13, %v25
    %v27 = vadd.f32 %v26, 0.0
    %v28 = vmul.f32 %v25, %v25
    %v29 = vadd.f32 %v28, 0.0
    %v30 = vadd.f32 %v19, 0.0
    %v31 = vadd.f32 %v10, 0.0
    %v32 = vmul.f32 %v24, 0.99
    %v34 = vrot.slane %v22, 7
    %v36 = vmul.f32 %v32, %v34
    %v38 = vrot.slane %v36, 1
    %v40 = vadd.f32 %v10, %v38
    %v41 = vsub.f32 %v40, %v16
    %v42 = vmul.f32 %v13, %v41
    %v44 = vrot.slane %v42, 7
    %v46 = vadd.f32 %v27, %v44
    %v47 = vmul.f32 %v41, %v41
    %v49 = vrot.slane %v47, 7
    %v51 = vadd.f32 %v29, %v49
    %v53 = vrot.slane %v19, 7
    %v55 = vadd.f32 %v30, %v53
    %v57 = vrot.slane %v10, 7
    %v59 = vadd.f32 %v31, %v57
    %v60 = vmul.f32 %v40, 0.99
    %v61 = vmul.f32 %v60, %v34
    %v63 = vrot.slane %v61, 1
    %v65 = vadd.f32 %v10, %v63
    %v66 = vsub.f32 %v65, %v16
    %v67 = vmul.f32 %v13, %v66
    %v69 = vrot.slane %v67, 6
    %v71 = vadd.f32 %v46, %v69
    %v72 = vmul.f32 %v66, %v66
    %v74 = vrot.slane %v72, 6
    %v76 = vadd.f32 %v51, %v74
    %v77 = vrot.slane %v19, 6
    %v79 = vadd.f32 %v55, %v77
    %v80 = vrot.slane %v10, 6
    %v82 = vadd.f32 %v59, %v80
    %v83 = vmul.f32 %v65, 0.99
    %v84 = vmul.f32 %v83, %v34
    %v86 = vrot.slane %v84, 1
    %v88 = vadd.f32 %v10, %v86
    %v89 = vsub.f32 %v88, %v16
    %v90 = vmul.f32 %v13, %v89
    %v92 = vrot.slane %v90, 5
    %v94 = vadd.f32 %v71, %v92
    %v95 = vmul.f32 %v89, %v89
    %v97 = vrot.slane %v95, 5
    %v99 = vadd.f32 %v76, %v97
    %v100 = vrot.slane %v19, 5
    %v102 = vadd.f32 %v79, %v100
    %v103 = vrot.slane %v10, 5
    %v105 = vadd.f32 %v82, %v103
    %v106 = vmul.f32 %v88, 0.99
    %v107 = vmul.f32 %v106, %v34
    %v109 = vrot.slane %v107, 1
    %v111 = vadd.f32 %v10, %v109
    %v112 = vsub.f32 %v111, %v16
    %v113 = vmul.f32 %v13, %v112
    %v115 = vrot.slane %v113, 4
    %v117 = vadd.f32 %v94, %v115
    %v118 = vmul.f32 %v112, %v112
    %v120 = vrot.slane %v118, 4
    %v122 = vadd.f32 %v99, %v120
    %v123 = vrot.slane %v19, 4
    %v125 = vadd.f32 %v102, %v123
    %v126 = vrot.slane %v10, 4
    %v128 = vadd.f32 %v105, %v126
    %v129 = vmul.f32 %v111, 0.99
    %v130 = vmul.f32 %v129, %v34
    %v132 = vrot.slane %v130, 1
    %v134 = vadd.f32 %v10, %v132
    %v135 = vsub.f32 %v134, %v16
    %v136 = vmul.f32 %v13, %v135
    %v138 = vrot.slane %v136, 3
    %v140 = vadd.f32 %v117, %v138
    %v141 = vmul.f32 %v135, %v135
    %v143 = vrot.slane %v141, 3
    %v145 = vadd.f32 %v122, %v143
    %v146 = vrot.slane %v19, 3
    %v148 = vadd.f32 %v125, %v146
    %v149 = vrot.slane %v10, 3
    %v151 = vadd.f32 %v128, %v149
    %v152 = vmul.f32 %v134, 0.99
    %v153 = vmul.f32 %v152, %v34
    %v155 = vrot.slane %v153, 1
    %v157 = vadd.f32 %v10, %v155
    %v158 = vsub.f32 %v157, %v16
    %v159 = vmul.f32 %v13, %v158
    %v161 = vrot.slane %v159, 2
    %v163 = vadd.f32 %v140, %v161
    %v164 = vmul.f32 %v158, %v158
    %v166 = vrot.slane %v164, 2
    %v168 = vadd.f32 %v145, %v166
    %v169 = vrot.slane %v19, 2
    %v171 = vadd.f32 %v148, %v169
    %v172 = vrot.slane %v10, 2
    %v174 = vadd.f32 %v151, %v172
    %v175 = vmul.f32 %v157, 0.99
    %v176 = vmul.f32 %v175, %v34
    %v178 = vrot.slane %v176, 1
    %v180 = vadd.f32 %v10, %v178
    %v181 = vsub.f32 %v180, %v16
    %v182 = vmul.f32 %v13, %v181
    %v184 = vrot.slane %v182, 1
    %v186 = vadd.f32 %v163, %v184
    %v187 = vmul.f32 %v181, %v181
    %v189 = vrot.slane %v187, 1
    %v191 = vadd.f32 %v168, %v189
    %v192 = vrot.slane %v19, 1
    %v194 = vadd.f32 %v171, %v192
    %v195 = vrot.slane %v10, 1
    %v197 = vadd.f32 %v174, %v195
    %v198 = vmul.f32 %v180, 0.99
    %v200 = vrot.slane %v21, 7
    %v202 = vmul.f32 %v198, %v200
    %v204 = vrot.slane %v202, 1
    %v206 = vadd.f32 %v9, %v204
    %v207 = vsub.f32 %v206, %v15
    %v208 = vmul.f32 %v12, %v207
    %v209 = vadd.f32 %v186, %v208
    %v210 = vmul.f32 %v207, %v207
    %v211 = vadd.f32 %v191, %v210
    %v212 = vadd.f32 %v194, %v18
    %v213 = vadd.f32 %v197, %v9
    %v214 = vmul.f32 %v206, 0.99
    %v215 = vmul.f32 %v214, %v200
    %v217 = vrot.slane %v215, 1
    %v219 = vadd.f32 %v9, %v217
    %v220 = vsub.f32 %v219, %v15
    %v221 = vmul.f32 %v12, %v220
    %v223 = vrot.slane %v221, 7
    %v225 = vadd.f32 %v209, %v223
    %v226 = vmul.f32 %v220, %v220
    %v228 = vrot.slane %v226, 7
    %v230 = vadd.f32 %v211, %v228
    %v232 = vrot.slane %v18, 7
    %v234 = vadd.f32 %v212, %v232
    %v236 = vrot.slane %v9, 7
    %v238 = vadd.f32 %v213, %v236
    %v239 = vmul.f32 %v219, 0.99
    %v240 = vmul.f32 %v239, %v200
    %v242 = vrot.slane %v240, 1
    %v244 = vadd.f32 %v9, %v242
    %v245 = vsub.f32 %v244, %v15
    %v246 = vmul.f32 %v12, %v245
    %v248 = vrot.slane %v246, 6
    %v250 = vadd.f32 %v225, %v248
    %v251 = vmul.f32 %v245, %v245
    %v253 = vrot.slane %v251, 6
    %v255 = vadd.f32 %v230, %v253
    %v256 = vrot.slane %v18, 6
    %v258 = vadd.f32 %v234, %v256
    %v259 = vrot.slane %v9, 6
    %v261 = vadd.f32 %v238, %v259
    %v262 = vmul.f32 %v244, 0.99
    %v263 = vmul.f32 %v262, %v200
    %v265 = vrot.slane %v263, 1
    %v267 = vadd.f32 %v9, %v265
    %v268 = vsub.f32 %v267, %v15
    %v269 = vmul.f32 %v12, %v268
    %v271 = vrot.slane %v269, 5
    %v273 = vadd.f32 %v250, %v271
    %v274 = vmul.f32 %v268, %v268
    %v276 = vrot.slane %v274, 5
    %v278 = vadd.f32 %v255, %v276
    %v279 = vrot.slane %v18, 5
    %v281 = vadd.f32 %v258, %v279
    %v282 = vrot.slane %v9, 5
    %v284 = vadd.f32 %v261, %v282
    %v285 = vmul.f32 %v267, 0.99
    %v286 = vmul.f32 %v285, %v200
    %v288 = vrot.slane %v286, 1
    %v290 = vadd.f32 %v9, %v288
    %v291 = vsub.f32 %v290, %v15
    %v292 = vmul.f32 %v12, %v291
    %v294 = vrot.slane %v292, 4
    %v296 = vadd.f32 %v273, %v294
    %v297 = vmul.f32 %v291, %v291
    %v299 = vrot.slane %v297, 4
    %v301 = vadd.f32 %v278, %v299
    %v302 = vrot.slane %v18, 4
    %v304 = vadd.f32 %v281, %v302
    %v305 = vrot.slane %v9, 4
    %v307 = vadd.f32 %v284, %v305
    %v308 = vmul.f32 %v290, 0.99
    %v309 = vmul.f32 %v308, %v200
    %v311 = vrot.slane %v309, 1
    %v313 = vadd.f32 %v9, %v311
    %v314 = vsub.f32 %v313, %v15
    %v315 = vmul.f32 %v12, %v314
    %v317 = vrot.slane %v315, 3
    %v319 = vadd.f32 %v296, %v317
    %v320 = vmul.f32 %v314, %v314
    %v322 = vrot.slane %v320, 3
    %v324 = vadd.f32 %v301, %v322
    %v325 = vrot.slane %v18, 3
    %v327 = vadd.f32 %v304, %v325
    %v328 = vrot.slane %v9, 3
    %v330 = vadd.f32 %v307, %v328
    %v331 = vmul.f32 %v313, 0.99
    %v332 = vmul.f32 %v331, %v200
    %v334 = vrot.slane %v332, 1
    %v336 = vadd.f32 %v9, %v334
    %v337 = vsub.f32 %v336, %v15
    %v338 = vmul.f32 %v12, %v337
    %v340 = vrot.slane %v338, 2
    %v342 = vadd.f32 %v319, %v340
    %v343 = vmul.f32 %v337, %v337
    %v345 = vrot.slane %v343, 2
    %v347 = vadd.f32 %v324, %v345
    %v348 = vrot.slane %v18, 2
    %v350 = vadd.f32 %v327, %v348
    %v351 = vrot.slane %v9, 2
    %v353 = vadd.f32 %v330, %v351
    %v354 = vmul.f32 %v336, 0.99
    %v355 = vmul.f32 %v354, %v200
    %v357 = vrot.slane %v355, 1
    %v359 = vadd.f32 %v9, %v357
    %v360 = vsub.f32 %v359, %v15
    %v361 = vmul.f32 %v12, %v360
    %v363 = vrot.slane %v361, 1
    %v365 = vadd.f32 %v342, %v363
    %v366 = vmul.f32 %v360, %v360
    %v368 = vrot.slane %v366, 1
    %v370 = vadd.f32 %v347, %v368
    %v371 = vrot.slane %v18, 1
    %v373 = vadd.f32 %v350, %v371
    %v374 = vrot.slane %v9, 1
    %v376 = vadd.f32 %v353, %v374
    %v377 = vsub.f32 0.0, %v365
    %v378 = vmul.f32 %v370, 0.5
    %v379 = vadd.f32 %v377, %v378
    %v380 = vmul.f32 %v373, 0.01
    %v381 = vsub.f32 %v379, %v380
    %v382 = vmul.f32 %v381, 0.0625
    %v383 = vsub.f32 0.0, %v376
    %v384 = vlaneseq
    %v385 = vand.u32 %v384, 127
    %vm386 = vcmp.lt.s32.totalorder %v385, 8
    %v387 = vsel %vm386, 1, 0
    %v388 = vcvt.s32.f32 %v387
    %v389 = vmul.f32 %v382, %v388
    %v390 = vmul.f32 %v376, %v388
    %v391 = vmul.f32 %v383, %v388
    %vm392 = vcmask 1047559
    %v393 = vsel %vm392, %v390, 0.0
    %394 = vadd.xlane.f32.xlu0 %v393
    %v395 = vpop.xlane.xlu0 %394
    %v396 = vmul.f32 %v395, 0.125
    %v397 = vsel %vm392, %v389, 0.0
    %398 = vadd.xlane.f32.xlu0 %v397
    %v399 = vpop.xlane.xlu0 %398
    %v400 = vmul.f32 %v399, 0.125
    %v401 = vsub.f32 %v390, %v396
    %v402 = vmul.f32 %v401, %v388
    %v403 = vmul.f32 %v402, %v402
    %v404 = vsel %vm392, %v403, 0.0
    %405 = vadd.xlane.f32.xlu0 %v404
    %v406 = vpop.xlane.xlu0 %405
    %v407 = vmul.f32 %v406, 0.125
    %v408 = vrsqrt.pop %v407
    %v409 = vmul.f32 %v407, %v408
    %vm410 = vcmp.eq.f32.partialorder %v407, inf
    %v411 = vsel %vm410, %v407, %v409
    %vm412 = vcmp.eq.f32.partialorder %v407, 0.0
    %v413 = vand.u32 %v407, 2147483648
    %v414 = vsel %vm412, %v413, %v411
    %v416 = vrot.slane %v391, 7
    %v419 = vrot.slane %v389, 6
    %v422 = vrot.slane %v390, 5
    %v425 = vrot.slane %v396, 4
    %v428 = vrot.slane %v414, 3
    %v431 = vrot.slane %v400, 2
    %vm433 = vcmask 1040384
    %v434 = vsel %vm433, %v416, %v419
    %vm435 = vcmask 1041408
    %v436 = vsel %vm435, %v434, %v422
    %vm437 = vcmask 1042432
    %v438 = vsel %vm437, %v436, %v425
    %vm439 = vcmask 1043456
    %v440 = vsel %vm439, %v438, %v428
    %vm441 = vcmask 1044480
    %v442 = vsel %vm441, %v440, %v431
    %vm443 = vcmask 1045504
    %v444 = vsel %vm443, %v442, 0.0
    %vm445 = vcmask 1046528
    %v446 = vsel %vm445, %v444, 0.0
    %447 = vst [vmem:[#allocation2] sm:$0xff] %v446
    // Predicated region
    $region6: #{run.1} parent=1 // pred_check
      _
    $region7: #{run.1} parent=1 // pred_check_branch
      %449 = sbr.rel (0) target = $region9
    $region8: #{run.1} parent=1 // pred_region
      %s451 = ssub.s32 128, 128
      %452 = vsyncadd [#allocation3], %s451
      %s454 = sshll.u32 [#allocation2], 4
      %s455 = int_to_ptr.vmem [resolvable:$true] %s454
      %457 = dma.vmem_to_hbm [thread:$0]  %s455, 128, %s1, [#allocation3]
    $region9: #{run.1} parent=1 // pred_fallthru
      _
    // Predicated region
    $region10: #{run.1} parent=1 // pred_check
      _
    $region11: #{run.1} parent=1 // pred_check_branch
      %459 = sbr.rel (0) target = $region13
    $region12: #{run.1} parent=1 // pred_region
      %460 = dma.done [#allocation3], 128
    $region13: #{run.1} parent=1 // pred_fallthru
      _
    %461 = vsyncpa [#allocation3], 1

</llo_original>
